<compile_context>
chip_gen: v6e
topology: v6e:2x2x1
jax: 0.10.0
libtpu: 0.0.40
codegen_flags: <defaults>
</compile_context>

<pallas_src>
import functools
import math

import numpy as np

import jax
import jax.numpy as jnp
from jax.experimental import pallas as pl
from jax.experimental.pallas import tpu as pltpu


# ---------------- interpolation-operator construction (host-side, tiny) ----------------

def _interp_matrix(in_size, out_size, scale, align_corners):
    """(out_size, in_size) f32 1-D linear interpolation matrix matching PyTorch
    F.interpolate (linear/bilinear/trilinear) coordinate semantics."""
    m = np.zeros((out_size, in_size), np.float32)
    for o in range(out_size):
        if align_corners:
            src = o * (in_size - 1) / (out_size - 1) if out_size > 1 else 0.0
        else:
            # PyTorch: src = (dst + 0.5) / scale - 0.5, negatives clamped to 0.
            src = max((o + 0.5) / float(scale) - 0.5, 0.0)
        i0 = min(int(math.floor(src)), in_size - 1)
        i1 = min(i0 + 1, in_size - 1)
        w1 = float(src - i0)
        m[o, i0] += 1.0 - w1
        m[o, i1] += w1
    return m


# ---------------- tiling / VMEM accounting ----------------

def _round_up(v, m):
    return (v + m - 1) // m * m


def _tile_bytes(shape, itemsize):
    """VMEM footprint of a tile: lane dim padded to 128, sublane dim padded to the
    32-bit-packing granule; leading dims multiply."""
    sub = max(8, 32 // max(1, itemsize))
    lead = 1
    for s in shape[:-2]:
        lead *= s
    if len(shape) == 1:
        return _round_up(shape[0], 128) * itemsize
    return lead * _round_up(shape[-2], sub) * _round_up(shape[-1], 128) * itemsize


def _vmem_need(c_blk, td, t_hwo, d, hw, in_bytes, out_bytes):
    """All per-TensorCore VMEM residents for one pipelined grid step."""
    x_blk = 2 * _tile_bytes((c_blk, d, hw), in_bytes)       # double-buffered input block
    ad_blk = 2 * _tile_bytes((td, d), 4)                    # depth operator tile
    b_blk = 2 * _tile_bytes((hw, t_hwo), 4)                 # spatial operator tile
    out_blk = 2 * _tile_bytes((c_blk, td, t_hwo), out_bytes)  # double-buffered output block
    tmp = _tile_bytes((c_blk * td, hw), 4) + _tile_bytes((c_blk * td, t_hwo), 4)
    return x_blk + ad_blk + b_blk + out_blk + tmp


def _vmem_budget_and_cap():
    try:
        cap = int(pltpu.get_tpu_info().vmem_capacity_bytes)
    except Exception:
        cap = 64 << 20  # conservative default = v7x per-TensorCore VMEM
    budget = int(cap * 0.75) - (4 << 20)  # leave headroom for compiler scratch / spills
    return budget, cap


def _pick_tiles(nc, do, d, hw, hwo_pad, in_bytes, out_bytes, budget):
    """Pick (c_blk, td, t_hwo) maximizing the dominant matmul's M (capped) and the operator
    tile width under the per-core VMEM budget."""
    do8 = do if do < 8 else _round_up(do, 8)
    td_cands = sorted({t for t in (do8, 512, 256, 128, 64, 32, 16, 8) if 0 < t <= do8},
                      reverse=True)
    n128 = hwo_pad // 128
    thwo_cands = sorted({k * 128 for k in range(1, n128 + 1) if n128 % k == 0}, reverse=True)
    cb_cands = [cb for cb in range(min(nc, 32), 0, -1) if nc % cb == 0]

    best_key, best = None, None
    for cb in cb_cands:
        for td in td_cands:
            for t_hwo in thwo_cands:
                need = _vmem_need(cb, td, t_hwo, d, hw, in_bytes, out_bytes)
                if need > budget:
                    continue
                m = cb * td
                key = (min(m, 512), t_hwo, m, -need)
                if best_key is None or key > best_key:
                    best_key, best = key, (cb, td, t_hwo, need)
    if best is None:
        # Pathologically large spatial slab: smallest legal blocks (correctness first).
        cb, td, t_hwo = 1, td_cands[-1], 128
        best = (cb, td, t_hwo, _vmem_need(cb, td, t_hwo, d, hw, in_bytes, out_bytes))
    return best


# ---------------- Pallas kernel ----------------

def _trilinear_kernel(x_ref, ad_ref, b_ref, o_ref, *, c_blk):
    # x_ref:  (c_blk, D, H*W)    input dtype   -- resident across the inner grid axes
    # ad_ref: (td, D)            f32           -- depth-interp rows for this output tile
    # b_ref:  (H*W, t_hwo)       f32           -- kron(A_h, A_w)^T column tile
    # o_ref:  (c_blk, td, t_hwo) out dtype     -- lane-dense store (t_hwo % 128 == 0)
    ad = ad_ref[...]
    b_op = b_ref[...]
    # Depth interpolation per channel; stack channels along M so the dominant spatial
    # matmul below runs with M = c_blk * td rows.
    rows = [jnp.dot(ad, x_ref[c].astype(jnp.float32), preferred_element_type=jnp.float32)
            for c in range(c_blk)]
    t1 = jnp.concatenate(rows, axis=0) if c_blk > 1 else rows[0]   # (c_blk*td, H*W)
    out = jnp.dot(t1, b_op, preferred_element_type=jnp.float32)    # (c_blk*td, t_hwo)
    o_ref[...] = out.reshape(o_ref.shape).astype(o_ref.dtype)


# ---------------- wrapper ----------------

def up_interpolate(x, scale_factor, mode="trilinear", align_corners=False, out_dtype=None):
    """x: [N, C, D, H, W]. Equivalent to
    F.interpolate(x, scale_factor=scale_factor, mode='trilinear', align_corners=...)."""
    if mode != "trilinear":
        # TODO(synk): only mode='trilinear' on 5-D NCDHW inputs is implemented.
        raise NotImplementedError("only mode='trilinear' is implemented")
    if scale_factor is None:
        raise ValueError("scale_factor must be given")

    n, c, d, h, w = x.shape
    if isinstance(scale_factor, (tuple, list)):
        sd, sh, sw = (float(s) for s in scale_factor)
    else:
        sd = sh = sw = float(scale_factor)

    do = int(math.floor(d * sd))
    ho = int(math.floor(h * sh))
    wo = int(math.floor(w * sw))
    nc, hw, hwo = n * c, h * w, ho * wo
    out_dtype = x.dtype if out_dtype is None else jnp.dtype(out_dtype)
    in_bytes = jnp.dtype(x.dtype).itemsize
    out_bytes = jnp.dtype(out_dtype).itemsize

    # 1-D operators; H and W combined so the spatial matmul's output is lane-dense.
    a_d = _interp_matrix(d, do, sd, align_corners)                      # (Do, D)
    b_hw = np.kron(_interp_matrix(h, ho, sh, align_corners),
                   _interp_matrix(w, wo, sw, align_corners)).T          # (H*W, Ho*Wo)

    # Pad the flattened spatial output dim to a multiple of 128 (lane-dense stores).
    hwo_pad = _round_up(hwo, 128)

    budget, cap = _vmem_budget_and_cap()
    c_blk, td, t_hwo, need = _pick_tiles(nc, do, d, hw, hwo_pad, in_bytes, out_bytes, budget)

    n_cb = nc // c_blk
    n_do = pl.cdiv(do, td)
    do_pad = n_do * td
    n_hwo = hwo_pad // t_hwo

    # Zero-pad the tiny operators instead of relying on ragged blocks.
    a_d_pad = np.zeros((do_pad, d), np.float32)
    a_d_pad[:do] = a_d
    b_pad = np.zeros((hw, hwo_pad), np.float32)
    b_pad[:, :hwo] = b_hw

    # NCDHW -> (N*C, D, H*W) is a pure reshape; no dtype cast (cast happens in-kernel).
    x_mat = x.reshape(nc, d, hw)

    vmem_limit = int(min(cap - (2 << 20), max(need + (2 << 20), 32 << 20)))

    cost = pl.CostEstimate(
        flops=int(2 * nc * do_pad * d * hw * n_hwo + 2 * nc * do_pad * hw * hwo_pad),
        transcendentals=0,
        bytes_accessed=int(nc * d * hw * in_bytes
                           + nc * do_pad * hwo_pad * out_bytes
                           + do_pad * d * 4
                           + n_cb * hw * hwo_pad * 4),
    )

    kernel = functools.partial(_trilinear_kernel, c_blk=c_blk)

    out_flat = pl.pallas_call(
        kernel,
        out_shape=jax.ShapeDtypeStruct((nc, do_pad, hwo_pad), out_dtype),
        grid=(n_cb, n_hwo, n_do),
        in_specs=[
            # input slab: resident across the two inner axes (fetched once per channel block)
            pl.BlockSpec((c_blk, d, hw), lambda b, j, i: (b, 0, 0)),
            # depth operator rows for this Do tile
            pl.BlockSpec((td, d), lambda b, j, i: (i, 0)),
            # spatial operator column tile (constant when it fits VMEM, streamed otherwise)
            pl.BlockSpec((hw, t_hwo), lambda b, j, i: (0, j)),
        ],
        out_specs=pl.BlockSpec((c_blk, td, t_hwo), lambda b, j, i: (b, i, j)),
        compiler_params=pltpu.CompilerParams(
            dimension_semantics=("parallel", "arbitrary", "arbitrary"),
            vmem_limit_bytes=vmem_limit),
        cost_estimate=cost,
    )(x_mat, jnp.asarray(a_d_pad), jnp.asarray(b_pad))

    # Strip padding (no copy when Do/Ho*Wo were already aligned) and restore NCDHW.
    return out_flat[:, :do, :hwo].reshape(n, c, do, ho, wo)


class UpInterpoate:
    """Mirror of the PyTorch module."""

    def __init__(self, scale_factor=None, mode="trilinear", align_corners=False):
        self.scale_factor = scale_factor
        self.mode = mode
        self.align_corners = align_corners

    def __call__(self, x):
        return up_interpolate(x, self.scale_factor, self.mode, self.align_corners)


if __name__ == "__main__":
    k1, k2 = jax.random.split(jax.random.PRNGKey(0))

    up = UpInterpoate(scale_factor=2.0, mode="trilinear", align_corners=False)

    # Primary check: small NCDHW volume, 2x trilinear upsample (aligned shapes).
    x = jax.random.normal(k1, (2, 4, 8, 8, 8), jnp.float32)
    out = jax.block_until_ready(up(x))
    assert out.shape == (2, 4, 16, 16, 16), out.shape
    ref = jax.image.resize(x, (2, 4, 16, 16, 16), method="trilinear")
    err = float(jnp.max(jnp.abs(out - ref)))
    assert jnp.allclose(out, ref, rtol=2e-2, atol=2e-2), err

    # Awkward shapes: exercises Do padding, Ho*Wo lane padding and the wrapper slice.
    x2 = jax.random.normal(k2, (1, 3, 5, 7, 6), jnp.float32)
    out2 = jax.block_until_ready(up(x2))
    assert out2.shape == (1, 3, 10, 14, 12), out2.shape
    ref2 = jax.image.resize(x2, (1, 3, 10, 14, 12), method="trilinear")
    err2 = float(jnp.max(jnp.abs(out2 - ref2)))
    assert jnp.allclose(out2, ref2, rtol=2e-2, atol=2e-2), err2

    print("KERNEL_OK")
</pallas_src>

<mosaic_0001>
module attributes {stable_mosaic.version = 11 : i64} {
  func.func @_trilinear_kernel(%arg0: i32, %arg1: i32, %arg2: i32, %arg3: memref<8x8x64xf32, #tpu.memory_space<vmem>>, %arg4: memref<16x8xf32, #tpu.memory_space<vmem>>, %arg5: memref<64x256xf32, #tpu.memory_space<vmem>>, %arg6: memref<8x16x256xf32, #tpu.memory_space<vmem>>) attributes {dimension_semantics = [#tpu.dimension_semantics<parallel>, #tpu.dimension_semantics<arbitrary>, #tpu.dimension_semantics<arbitrary>], iteration_bounds = array<i64: 1, 1, 1>, scalar_prefetch = 0 : i64, scratch_operands = 0 : i64, tpu.core_type = #tpu.core_type<tc>, window_params = [{transform_indices = @transform_0, window_bounds = array<i64: 8, 8, 64>}, {transform_indices = @transform_1, window_bounds = array<i64: 16, 8>}, {transform_indices = @transform_2, window_bounds = array<i64: 64, 256>}, {transform_indices = @transform_3, window_bounds = array<i64: 8, 16, 256>}]} {
    %c0 = arith.constant 0 : index
    %c0_0 = arith.constant 0 : index
    %0 = vector.load %arg4[%c0, %c0_0] : memref<16x8xf32, #tpu.memory_space<vmem>>, vector<16x8xf32>
    %c0_1 = arith.constant 0 : index
    %c0_2 = arith.constant 0 : index
    %1 = vector.load %arg5[%c0_1, %c0_2] : memref<64x256xf32, #tpu.memory_space<vmem>>, vector<64x256xf32>
    %c0_3 = arith.constant 0 : index
    %c0_4 = arith.constant 0 : index
    %c0_5 = arith.constant 0 : index
    %2 = vector.load %arg3[%c0_3, %c0_4, %c0_5] : memref<8x8x64xf32, #tpu.memory_space<vmem>>, vector<1x8x64xf32>
    %3 = vector.shape_cast %2 : vector<1x8x64xf32> to vector<8x64xf32>
    %cst = arith.constant dense<0.000000e+00> : vector<16x64xf32>
    %4 = tpu.matmul %0, %3, %cst {dimension_numbers = #tpu.dot_dimension_numbers<[1], [0], [0], [1], [0, 0, 1, 1], [], []>} : vector<16x8xf32>, vector<8x64xf32>, vector<16x64xf32> -> vector<16x64xf32>
    %c1 = arith.constant 1 : index
    %c0_6 = arith.constant 0 : index
    %c0_7 = arith.constant 0 : index
    %5 = vector.load %arg3[%c1, %c0_6, %c0_7] : memref<8x8x64xf32, #tpu.memory_space<vmem>>, vector<1x8x64xf32>
    %6 = vector.shape_cast %5 : vector<1x8x64xf32> to vector<8x64xf32>
    %cst_8 = arith.constant dense<0.000000e+00> : vector<16x64xf32>
    %7 = tpu.matmul %0, %6, %cst_8 {dimension_numbers = #tpu.dot_dimension_numbers<[1], [0], [0], [1], [0, 0, 1, 1], [], []>} : vector<16x8xf32>, vector<8x64xf32>, vector<16x64xf32> -> vector<16x64xf32>
    %c2 = arith.constant 2 : index
    %c0_9 = arith.constant 0 : index
    %c0_10 = arith.constant 0 : index
    %8 = vector.load %arg3[%c2, %c0_9, %c0_10] : memref<8x8x64xf32, #tpu.memory_space<vmem>>, vector<1x8x64xf32>
    %9 = vector.shape_cast %8 : vector<1x8x64xf32> to vector<8x64xf32>
    %cst_11 = arith.constant dense<0.000000e+00> : vector<16x64xf32>
    %10 = tpu.matmul %0, %9, %cst_11 {dimension_numbers = #tpu.dot_dimension_numbers<[1], [0], [0], [1], [0, 0, 1, 1], [], []>} : vector<16x8xf32>, vector<8x64xf32>, vector<16x64xf32> -> vector<16x64xf32>
    %c3 = arith.constant 3 : index
    %c0_12 = arith.constant 0 : index
    %c0_13 = arith.constant 0 : index
    %11 = vector.load %arg3[%c3, %c0_12, %c0_13] : memref<8x8x64xf32, #tpu.memory_space<vmem>>, vector<1x8x64xf32>
    %12 = vector.shape_cast %11 : vector<1x8x64xf32> to vector<8x64xf32>
    %cst_14 = arith.constant dense<0.000000e+00> : vector<16x64xf32>
    %13 = tpu.matmul %0, %12, %cst_14 {dimension_numbers = #tpu.dot_dimension_numbers<[1], [0], [0], [1], [0, 0, 1, 1], [], []>} : vector<16x8xf32>, vector<8x64xf32>, vector<16x64xf32> -> vector<16x64xf32>
    %c4 = arith.constant 4 : index
    %c0_15 = arith.constant 0 : index
    %c0_16 = arith.constant 0 : index
    %14 = vector.load %arg3[%c4, %c0_15, %c0_16] : memref<8x8x64xf32, #tpu.memory_space<vmem>>, vector<1x8x64xf32>
    %15 = vector.shape_cast %14 : vector<1x8x64xf32> to vector<8x64xf32>
    %cst_17 = arith.constant dense<0.000000e+00> : vector<16x64xf32>
    %16 = tpu.matmul %0, %15, %cst_17 {dimension_numbers = #tpu.dot_dimension_numbers<[1], [0], [0], [1], [0, 0, 1, 1], [], []>} : vector<16x8xf32>, vector<8x64xf32>, vector<16x64xf32> -> vector<16x64xf32>
    %c5 = arith.constant 5 : index
    %c0_18 = arith.constant 0 : index
    %c0_19 = arith.constant 0 : index
    %17 = vector.load %arg3[%c5, %c0_18, %c0_19] : memref<8x8x64xf32, #tpu.memory_space<vmem>>, vector<1x8x64xf32>
    %18 = vector.shape_cast %17 : vector<1x8x64xf32> to vector<8x64xf32>
    %cst_20 = arith.constant dense<0.000000e+00> : vector<16x64xf32>
    %19 = tpu.matmul %0, %18, %cst_20 {dimension_numbers = #tpu.dot_dimension_numbers<[1], [0], [0], [1], [0, 0, 1, 1], [], []>} : vector<16x8xf32>, vector<8x64xf32>, vector<16x64xf32> -> vector<16x64xf32>
    %c6 = arith.constant 6 : index
    %c0_21 = arith.constant 0 : index
    %c0_22 = arith.constant 0 : index
    %20 = vector.load %arg3[%c6, %c0_21, %c0_22] : memref<8x8x64xf32, #tpu.memory_space<vmem>>, vector<1x8x64xf32>
    %21 = vector.shape_cast %20 : vector<1x8x64xf32> to vector<8x64xf32>
    %cst_23 = arith.constant dense<0.000000e+00> : vector<16x64xf32>
    %22 = tpu.matmul %0, %21, %cst_23 {dimension_numbers = #tpu.dot_dimension_numbers<[1], [0], [0], [1], [0, 0, 1, 1], [], []>} : vector<16x8xf32>, vector<8x64xf32>, vector<16x64xf32> -> vector<16x64xf32>
    %c7 = arith.constant 7 : index
    %c0_24 = arith.constant 0 : index
    %c0_25 = arith.constant 0 : index
    %23 = vector.load %arg3[%c7, %c0_24, %c0_25] : memref<8x8x64xf32, #tpu.memory_space<vmem>>, vector<1x8x64xf32>
    %24 = vector.shape_cast %23 : vector<1x8x64xf32> to vector<8x64xf32>
    %cst_26 = arith.constant dense<0.000000e+00> : vector<16x64xf32>
    %25 = tpu.matmul %0, %24, %cst_26 {dimension_numbers = #tpu.dot_dimension_numbers<[1], [0], [0], [1], [0, 0, 1, 1], [], []>} : vector<16x8xf32>, vector<8x64xf32>, vector<16x64xf32> -> vector<16x64xf32>
    %26 = tpu.concatenate %4, %7, %10, %13, %16, %19, %22, %25 in 0 : vector<16x64xf32>, vector<16x64xf32>, vector<16x64xf32>, vector<16x64xf32>, vector<16x64xf32>, vector<16x64xf32>, vector<16x64xf32>, vector<16x64xf32> -> vector<128x64xf32>
    %cst_27 = arith.constant dense<0.000000e+00> : vector<128x256xf32>
    %27 = tpu.matmul %26, %1, %cst_27 {dimension_numbers = #tpu.dot_dimension_numbers<[1], [0], [0], [1], [0, 0, 1, 1], [], []>} : vector<128x64xf32>, vector<64x256xf32>, vector<128x256xf32> -> vector<128x256xf32>
    %28 = vector.shape_cast %27 : vector<128x256xf32> to vector<8x16x256xf32>
    %c0_28 = arith.constant 0 : index
    %c0_29 = arith.constant 0 : index
    %c0_30 = arith.constant 0 : index
    %29 = vector.load %arg6[%c0_28, %c0_29, %c0_30] : memref<8x16x256xf32, #tpu.memory_space<vmem>>, vector<8x16x256xf32>
    tpu.vector_store %arg6[%c0_28, %c0_29, %c0_30], %28 {strides = array<i32>} : memref<8x16x256xf32, #tpu.memory_space<vmem>>, vector<8x16x256xf32>,
    return
  }
  func.func @transform_0(%arg0: i32, %arg1: i32, %arg2: i32) -> (i32, i32, i32) {
    %c0_i32 = arith.constant 0 : i32
    %c0_i32_0 = arith.constant 0 : i32
    %c0_i32_1 = arith.constant 0 : i32
    return %arg0, %c0_i32, %c0_i32_0 : i32, i32, i32
  }
  func.func @transform_1(%arg0: i32, %arg1: i32, %arg2: i32) -> (i32, i32) {
    %c0_i32 = arith.constant 0 : i32
    %c0_i32_0 = arith.constant 0 : i32
    return %arg2, %c0_i32 : i32, i32
  }
  func.func @transform_2(%arg0: i32, %arg1: i32, %arg2: i32) -> (i32, i32) {
    %c0_i32 = arith.constant 0 : i32
    %c0_i32_0 = arith.constant 0 : i32
    return %c0_i32, %arg1 : i32, i32
  }
  func.func @transform_3(%arg0: i32, %arg1: i32, %arg2: i32) -> (i32, i32, i32) {
    %c0_i32 = arith.constant 0 : i32
    return %arg0, %arg2, %arg1 : i32, i32, i32
  }
}

</mosaic_0001>

<llo_original>
// kernel: tpu_custom_call.1
$region0: #{tpu_custom_call.1}
  #allocation0 [shape = 'u32[]', space=smem, size = 0x4, offset = 0x4, fixed_abs, tag = 'smem constant byte address 0x4 - core index']
  #allocation1 [shape = 'u32[144,128]{1,0:T(1,128)}', space=vmem, size = 0x12000, scoped, tag = 'internal scratch']
  %s0 = inlined_call_operand.hbm [shape: f32[8,8,64], index: 0, kind: input, shape index: {}]
  %s1 = inlined_call_operand.vmem [shape: f32[16,8], index: 1, kind: input, shape index: {}]
  %s2 = inlined_call_operand.hbm [shape: f32[64,256], index: 2, kind: input, shape index: {}]
  %s3 = inlined_call_operand.hbm [shape: f32[8,16,256], index: 3, kind: output, shape index: {}]
  %s4 = sld [smem:[#allocation0]]
  $region30: #{tpu_custom_call.1} parent=0
    _
  %s6 = ssub.s32 1, %s4
  %s7 = scalar_select 0, %s6, %s4
  $region1: #{tpu_custom_call.1} parent=0
    #allocation2 [shape = 'u8[32768]{0}', space=vmem, size = 0x8000, scoped, tag = 'input window, operand 0, single buffered']
    #allocation3 [shape = 's32[1]{0}', space=sflag, size = 0x4, scoped, tag = 'scoped memory for tpu_custom_call.1']
    #allocation4 [shape = 's32[1]{0}', space=sflag, size = 0x4, scoped, tag = 'scoped memory for tpu_custom_call.1']
    #allocation5 [shape = 'u8[65536]{0}', space=vmem, size = 0x10000, scoped, tag = 'input window, operand 2, single buffered']
    #allocation6 [shape = 's32[1]{0}', space=sflag, size = 0x4, scoped, tag = 'scoped memory for tpu_custom_call.1']
    #allocation7 [shape = 'u8[131072]{0}', space=vmem, size = 0x20000, scoped, tag = 'output window, operand 0, single buffered']
    %8 = vsyncpa [#allocation3], 0
    %9 = vsyncpa [#allocation6], 0
    %10 = vsyncpa [#allocation4], 0
    // Predicated region
    $region2: #{tpu_custom_call.1} parent=1 // pred_check
      _
    $region3: #{tpu_custom_call.1} parent=1 // pred_check_branch
      %12 = sbr.rel (0) target = $region5
    $region4: #{tpu_custom_call.1} parent=1 // pred_region
      %s14 = ssub.s32 1024, 1024
      %15 = vsyncadd [#allocation3], %s14
      %s16 = sshll.u32 [#allocation2], 4
      %s17 = int_to_ptr.vmem [resolvable:$true] %s16
      %22 = dma.hbm_to_vmem [thread:$0]  %s0, 1024, %s17, [#allocation3], 128, 128, 8
    $region5: #{tpu_custom_call.1} parent=1 // pred_fallthru
      _
    // Predicated region
    $region6: #{tpu_custom_call.1} parent=1 // pred_check
      _
    $region7: #{tpu_custom_call.1} parent=1 // pred_check_branch
      %24 = sbr.rel (0) target = $region9
    $region8: #{tpu_custom_call.1} parent=1 // pred_region
      _
    $region9: #{tpu_custom_call.1} parent=1 // pred_fallthru
      _
    // Predicated region
    $region10: #{tpu_custom_call.1} parent=1 // pred_check
      _
    $region11: #{tpu_custom_call.1} parent=1 // pred_check_branch
      %26 = sbr.rel (0) target = $region13
    $region12: #{tpu_custom_call.1} parent=1 // pred_region
      %s28 = ssub.s32 2048, 2048
      %29 = vsyncadd [#allocation6], %s28
      %s30 = sshll.u32 [#allocation5], 4
      %s31 = int_to_ptr.vmem [resolvable:$true] %s30
      %36 = dma.hbm_to_vmem [thread:$0]  %s2, 2048, %s31, [#allocation6], 256, 256, 16
    $region13: #{tpu_custom_call.1} parent=1 // pred_fallthru
      _
    // Predicated region
    $region14: #{tpu_custom_call.1} parent=1 // pred_check
      _
    $region15: #{tpu_custom_call.1} parent=1 // pred_check_branch
      %38 = sbr.rel (0) target = $region17
    $region16: #{tpu_custom_call.1} parent=1 // pred_region
      %39 = dma.done [#allocation3], 1024
    $region17: #{tpu_custom_call.1} parent=1 // pred_fallthru
      _
    // Predicated region
    $region18: #{tpu_custom_call.1} parent=1 // pred_check
      _
    $region19: #{tpu_custom_call.1} parent=1 // pred_check_branch
      %41 = sbr.rel (0) target = $region21
    $region20: #{tpu_custom_call.1} parent=1 // pred_region
      %42 = dma.done [#allocation6], 2048
    $region21: #{tpu_custom_call.1} parent=1 // pred_fallthru
      _
    %v43 = vld [vmem:[%s1] sm:$0xff]
    %v44 = vld [vmem:[%s1 + $0x8] sm:$0xff]
    %v45 = vld [vmem:[#allocation5] sm:$0xff]
    %v46 = vld [vmem:[#allocation5 + $0x8] sm:$0xff]
    %v47 = vld [vmem:[#allocation5 + $0x10] sm:$0xff]
    %v48 = vld [vmem:[#allocation5 + $0x18] sm:$0xff]
    %v49 = vld [vmem:[#allocation5 + $0x20] sm:$0xff]
    %v50 = vld [vmem:[#allocation5 + $0x28] sm:$0xff]
    %v51 = vld [vmem:[#allocation5 + $0x30] sm:$0xff]
    %v52 = vld [vmem:[#allocation5 + $0x38] sm:$0xff]
    %v53 = vld [vmem:[#allocation5 + $0x40] sm:$0xff]
    %v54 = vld [vmem:[#allocation5 + $0x48] sm:$0xff]
    %v55 = vld [vmem:[#allocation5 + $0x50] sm:$0xff]
    %v56 = vld [vmem:[#allocation5 + $0x58] sm:$0xff]
    %v57 = vld [vmem:[#allocation5 + $0x60] sm:$0xff]
    %v58 = vld [vmem:[#allocation5 + $0x68] sm:$0xff]
    %v59 = vld [vmem:[#allocation5 + $0x70] sm:$0xff]
    %v60 = vld [vmem:[#allocation5 + $0x78] sm:$0xff]
    %v61 = vld [vmem:[#allocation2] sm:$0xff]
    %vm62 = vcmask 64512
    %v64 = vsel %vm62, %v43, 0
    %v67 = vsel %vm62, %v44, 0
    %69 = vmatprep.subr.mxu0 0.0
    %70 = vmatpush1.msra.mxu0 0.0
    %71 = vmatprep.subr.mxu0 0.0
    %72 = vmatpush1.msra.mxu0 0.0
    %73 = vmatprep.subr.mxu0 0.0
    %74 = vmatpush1.msra.mxu0 0.0
    %75 = vmatprep.subr.mxu0 0.0
    %76 = vmatpush1.msra.mxu0 0.0
    %77 = vmatprep.subr.mxu0 0.0
    %78 = vmatpush1.msra.mxu0 0.0
    %79 = vmatprep.subr.mxu0 0.0
    %80 = vmatpush1.msra.mxu0 0.0
    %81 = vmatprep.subr.mxu0 0.0
    %82 = vmatpush1.msra.mxu0 0.0
    %83 = vmatprep.subr.mxu0 0.0
    %84 = vmatpush1.msra.mxu0 0.0
    %85 = vmatprep.subr.mxu0 0.0
    %86 = vmatpush1.msra.mxu0 0.0
    %87 = vmatprep.subr.mxu0 0.0
    %88 = vmatpush1.msra.mxu0 0.0
    %89 = vmatprep.subr.mxu0 0.0
    %90 = vmatpush1.msra.mxu0 0.0
    %91 = vmatprep.subr.mxu0 0.0
    %92 = vmatpush1.msra.mxu0 0.0
    %93 = vmatprep.subr.mxu0 0.0
    %94 = vmatpush1.msra.mxu0 0.0
    %95 = vmatprep.subr.mxu0 0.0
    %96 = vmatpush1.msra.mxu0 0.0
    %97 = vmatprep.subr.mxu0 0.0
    %98 = vmatpush1.msra.mxu0 0.0
    %99 = vmatprep.subr.mxu0 0.0
    %100 = vmatpush1.msra.mxu0 %v61
    %101 = vmatprep.subr.mxu0 0.0
    %102 = vmatpush2.msra.mxu0 0.0
    %103 = vmatprep.subr.mxu0 0.0
    %104 = vmatpush2.msra.mxu0 0.0
    %105 = vmatprep.subr.mxu0 0.0
    %106 = vmatpush2.msra.mxu0 0.0
    %107 = vmatprep.subr.mxu0 0.0
    %108 = vmatpush2.msra.mxu0 0.0
    %109 = vmatprep.subr.mxu0 0.0
    %110 = vmatpush2.msra.mxu0 0.0
    %111 = vmatprep.subr.mxu0 0.0
    %112 = vmatpush2.msra.mxu0 0.0
    %113 = vmatprep.subr.mxu0 0.0
    %114 = vmatpush2.msra.mxu0 0.0
    %115 = vmatprep.subr.mxu0 0.0
    %116 = vmatpush2.msra.mxu0 0.0
    %117 = vmatprep.subr.mxu0 0.0
    %118 = vmatpush2.msra.mxu0 0.0
    %119 = vmatprep.subr.mxu0 0.0
    %120 = vmatpush2.msra.mxu0 0.0
    %121 = vmatprep.subr.mxu0 0.0
    %122 = vmatpush2.msra.mxu0 0.0
    %123 = vmatprep.subr.mxu0 0.0
    %124 = vmatpush2.msra.mxu0 0.0
    %125 = vmatprep.subr.mxu0 0.0
    %126 = vmatpush2.msra.mxu0 0.0
    %127 = vmatprep.subr.mxu0 0.0
    %128 = vmatpush2.msra.mxu0 0.0
    %129 = vmatprep.subr.mxu0 0.0
    %130 = vmatpush2.msra.mxu0 0.0
    %131 = vmatprep.subr.mxu0 0.0
    %132 = vmatpush2.msra.mxu0 0.0
    %133 = vmatprep.mubr.f32.mxu0 0.0
    %134 = vmatmul.mubr.f32.gmra.mxu0 %v64
    %v135 = vpop.f32.mrf.mxu0
    %v136 = vadd.f32 0.0, %v135
    %v137 = vpop.f32.mrf.mxu0
    %138 = vmatprep.mubr.f32.mxu0 0.0
    %139 = vmatmul.mubr.f32.gmra.mxu0 %v67
    %v140 = vpop.f32.mrf.mxu0
    %v141 = vadd.f32 0.0, %v140
    %v142 = vpop.f32.mrf.mxu0
    %143 = vdwg.mxu0
    %s144 = scalar_lea.vmem [#allocation2], 8
    %v145 = vld [vmem:[%s144] sm:$0xff]
    %146 = vmatprep.subr.mxu0 0.0
    %147 = vmatpush1.msra.mxu0 0.0
    %148 = vmatprep.subr.mxu0 0.0
    %149 = vmatpush1.msra.mxu0 0.0
    %150 = vmatprep.subr.mxu0 0.0
    %151 = vmatpush1.msra.mxu0 0.0
    %152 = vmatprep.subr.mxu0 0.0
    %153 = vmatpush1.msra.mxu0 0.0
    %154 = vmatprep.subr.mxu0 0.0
    %155 = vmatpush1.msra.mxu0 0.0
    %156 = vmatprep.subr.mxu0 0.0
    %157 = vmatpush1.msra.mxu0 0.0
    %158 = vmatprep.subr.mxu0 0.0
    %159 = vmatpush1.msra.mxu0 0.0
    %160 = vmatprep.subr.mxu0 0.0
    %161 = vmatpush1.msra.mxu0 0.0
    %162 = vmatprep.subr.mxu0 0.0
    %163 = vmatpush1.msra.mxu0 0.0
    %164 = vmatprep.subr.mxu0 0.0
    %165 = vmatpush1.msra.mxu0 0.0
    %166 = vmatprep.subr.mxu0 0.0
    %167 = vmatpush1.msra.mxu0 0.0
    %168 = vmatprep.subr.mxu0 0.0
    %169 = vmatpush1.msra.mxu0 0.0
    %170 = vmatprep.subr.mxu0 0.0
    %171 = vmatpush1.msra.mxu0 0.0
    %172 = vmatprep.subr.mxu0 0.0
    %173 = vmatpush1.msra.mxu0 0.0
    %174 = vmatprep.subr.mxu0 0.0
    %175 = vmatpush1.msra.mxu0 0.0
    %176 = vmatprep.subr.mxu0 0.0
    %177 = vmatpush1.msra.mxu0 %v145
    %178 = vmatprep.subr.mxu0 0.0
    %179 = vmatpush2.msra.mxu0 0.0
    %180 = vmatprep.subr.mxu0 0.0
    %181 = vmatpush2.msra.mxu0 0.0
    %182 = vmatprep.subr.mxu0 0.0
    %183 = vmatpush2.msra.mxu0 0.0
    %184 = vmatprep.subr.mxu0 0.0
    %185 = vmatpush2.msra.mxu0 0.0
    %186 = vmatprep.subr.mxu0 0.0
    %187 = vmatpush2.msra.mxu0 0.0
    %188 = vmatprep.subr.mxu0 0.0
    %189 = vmatpush2.msra.mxu0 0.0
    %190 = vmatprep.subr.mxu0 0.0
    %191 = vmatpush2.msra.mxu0 0.0
    %192 = vmatprep.subr.mxu0 0.0
    %193 = vmatpush2.msra.mxu0 0.0
    %194 = vmatprep.subr.mxu0 0.0
    %195 = vmatpush2.msra.mxu0 0.0
    %196 = vmatprep.subr.mxu0 0.0
    %197 = vmatpush2.msra.mxu0 0.0
    %198 = vmatprep.subr.mxu0 0.0
    %199 = vmatpush2.msra.mxu0 0.0
    %200 = vmatprep.subr.mxu0 0.0
    %201 = vmatpush2.msra.mxu0 0.0
    %202 = vmatprep.subr.mxu0 0.0
    %203 = vmatpush2.msra.mxu0 0.0
    %204 = vmatprep.subr.mxu0 0.0
    %205 = vmatpush2.msra.mxu0 0.0
    %206 = vmatprep.subr.mxu0 0.0
    %207 = vmatpush2.msra.mxu0 0.0
    %208 = vmatprep.subr.mxu0 0.0
    %209 = vmatpush2.msra.mxu0 0.0
    %210 = vmatprep.mubr.f32.mxu0 0.0
    %211 = vmatmul.mubr.f32.gmra.mxu0 %v64
    %v212 = vpop.f32.mrf.mxu0
    %v213 = vadd.f32 0.0, %v212
    %v214 = vpop.f32.mrf.mxu0
    %215 = vmatprep.mubr.f32.mxu0 0.0
    %216 = vmatmul.mubr.f32.gmra.mxu0 %v67
    %v217 = vpop.f32.mrf.mxu0
    %v218 = vadd.f32 0.0, %v217
    %v219 = vpop.f32.mrf.mxu0
    %220 = vdwg.mxu0
    %s221 = scalar_lea.vmem [#allocation2], 16
    %v222 = vld [vmem:[%s221] sm:$0xff]
    %223 = vmatprep.subr.mxu0 0.0
    %224 = vmatpush1.msra.mxu0 0.0
    %225 = vmatprep.subr.mxu0 0.0
    %226 = vmatpush1.msra.mxu0 0.0
    %227 = vmatprep.subr.mxu0 0.0
    %228 = vmatpush1.msra.mxu0 0.0
    %229 = vmatprep.subr.mxu0 0.0
    %230 = vmatpush1.msra.mxu0 0.0
    %231 = vmatprep.subr.mxu0 0.0
    %232 = vmatpush1.msra.mxu0 0.0
    %233 = vmatprep.subr.mxu0 0.0
    %234 = vmatpush1.msra.mxu0 0.0
    %235 = vmatprep.subr.mxu0 0.0
    %236 = vmatpush1.msra.mxu0 0.0
    %237 = vmatprep.subr.mxu0 0.0
    %238 = vmatpush1.msra.mxu0 0.0
    %239 = vmatprep.subr.mxu0 0.0
    %240 = vmatpush1.msra.mxu0 0.0
    %241 = vmatprep.subr.mxu0 0.0
    %242 = vmatpush1.msra.mxu0 0.0
    %243 = vmatprep.subr.mxu0 0.0
    %244 = vmatpush1.msra.mxu0 0.0
    %245 = vmatprep.subr.mxu0 0.0
    %246 = vmatpush1.msra.mxu0 0.0
    %247 = vmatprep.subr.mxu0 0.0
    %248 = vmatpush1.msra.mxu0 0.0
    %249 = vmatprep.subr.mxu0 0.0
    %250 = vmatpush1.msra.mxu0 0.0
    %251 = vmatprep.subr.mxu0 0.0
    %252 = vmatpush1.msra.mxu0 0.0
    %253 = vmatprep.subr.mxu0 0.0
    %254 = vmatpush1.msra.mxu0 %v222
    %255 = vmatprep.subr.mxu0 0.0
    %256 = vmatpush2.msra.mxu0 0.0
    %257 = vmatprep.subr.mxu0 0.0
    %258 = vmatpush2.msra.mxu0 0.0
    %259 = vmatprep.subr.mxu0 0.0
    %260 = vmatpush2.msra.mxu0 0.0
    %261 = vmatprep.subr.mxu0 0.0
    %262 = vmatpush2.msra.mxu0 0.0
    %263 = vmatprep.subr.mxu0 0.0
    %264 = vmatpush2.msra.mxu0 0.0
    %265 = vmatprep.subr.mxu0 0.0
    %266 = vmatpush2.msra.mxu0 0.0
    %267 = vmatprep.subr.mxu0 0.0
    %268 = vmatpush2.msra.mxu0 0.0
    %269 = vmatprep.subr.mxu0 0.0
    %270 = vmatpush2.msra.mxu0 0.0
    %271 = vmatprep.subr.mxu0 0.0
    %272 = vmatpush2.msra.mxu0 0.0
    %273 = vmatprep.subr.mxu0 0.0
    %274 = vmatpush2.msra.mxu0 0.0
    %275 = vmatprep.subr.mxu0 0.0
    %276 = vmatpush2.msra.mxu0 0.0
    %277 = vmatprep.subr.mxu0 0.0
    %278 = vmatpush2.msra.mxu0 0.0
    %279 = vmatprep.subr.mxu0 0.0
    %280 = vmatpush2.msra.mxu0 0.0
    %281 = vmatprep.subr.mxu0 0.0
    %282 = vmatpush2.msra.mxu0 0.0
    %283 = vmatprep.subr.mxu0 0.0
    %284 = vmatpush2.msra.mxu0 0.0
    %285 = vmatprep.subr.mxu0 0.0
    %286 = vmatpush2.msra.mxu0 0.0
    %287 = vmatprep.mubr.f32.mxu0 0.0
    %288 = vmatmul.mubr.f32.gmra.mxu0 %v64
    %v289 = vpop.f32.mrf.mxu0
    %v290 = vadd.f32 0.0, %v289
    %v291 = vpop.f32.mrf.mxu0
    %292 = vmatprep.mubr.f32.mxu0 0.0
    %293 = vmatmul.mubr.f32.gmra.mxu0 %v67
    %v294 = vpop.f32.mrf.mxu0
    %v295 = vadd.f32 0.0, %v294
    %v296 = vpop.f32.mrf.mxu0
    %297 = vdwg.mxu0
    %s298 = scalar_lea.vmem [#allocation2], 24
    %v299 = vld [vmem:[%s298] sm:$0xff]
    %300 = vmatprep.subr.mxu0 0.0
    %301 = vmatpush1.msra.mxu0 0.0
    %302 = vmatprep.subr.mxu0 0.0
    %303 = vmatpush1.msra.mxu0 0.0
    %304 = vmatprep.subr.mxu0 0.0
    %305 = vmatpush1.msra.mxu0 0.0
    %306 = vmatprep.subr.mxu0 0.0
    %307 = vmatpush1.msra.mxu0 0.0
    %308 = vmatprep.subr.mxu0 0.0
    %309 = vmatpush1.msra.mxu0 0.0
    %310 = vmatprep.subr.mxu0 0.0
    %311 = vmatpush1.msra.mxu0 0.0
    %312 = vmatprep.subr.mxu0 0.0
    %313 = vmatpush1.msra.mxu0 0.0
    %314 = vmatprep.subr.mxu0 0.0
    %315 = vmatpush1.msra.mxu0 0.0
    %316 = vmatprep.subr.mxu0 0.0
    %317 = vmatpush1.msra.mxu0 0.0
    %318 = vmatprep.subr.mxu0 0.0
    %319 = vmatpush1.msra.mxu0 0.0
    %320 = vmatprep.subr.mxu0 0.0
    %321 = vmatpush1.msra.mxu0 0.0
    %322 = vmatprep.subr.mxu0 0.0
    %323 = vmatpush1.msra.mxu0 0.0
    %324 = vmatprep.subr.mxu0 0.0
    %325 = vmatpush1.msra.mxu0 0.0
    %326 = vmatprep.subr.mxu0 0.0
    %327 = vmatpush1.msra.mxu0 0.0
    %328 = vmatprep.subr.mxu0 0.0
    %329 = vmatpush1.msra.mxu0 0.0
    %330 = vmatprep.subr.mxu0 0.0
    %331 = vmatpush1.msra.mxu0 %v299
    %332 = vmatprep.subr.mxu0 0.0
    %333 = vmatpush2.msra.mxu0 0.0
    %334 = vmatprep.subr.mxu0 0.0
    %335 = vmatpush2.msra.mxu0 0.0
    %336 = vmatprep.subr.mxu0 0.0
    %337 = vmatpush2.msra.mxu0 0.0
    %338 = vmatprep.subr.mxu0 0.0
    %339 = vmatpush2.msra.mxu0 0.0
    %340 = vmatprep.subr.mxu0 0.0
    %341 = vmatpush2.msra.mxu0 0.0
    %342 = vmatprep.subr.mxu0 0.0
    %343 = vmatpush2.msra.mxu0 0.0
    %344 = vmatprep.subr.mxu0 0.0
    %345 = vmatpush2.msra.mxu0 0.0
    %346 = vmatprep.subr.mxu0 0.0
    %347 = vmatpush2.msra.mxu0 0.0
    %348 = vmatprep.subr.mxu0 0.0
    %349 = vmatpush2.msra.mxu0 0.0
    %350 = vmatprep.subr.mxu0 0.0
    %351 = vmatpush2.msra.mxu0 0.0
    %352 = vmatprep.subr.mxu0 0.0
    %353 = vmatpush2.msra.mxu0 0.0
    %354 = vmatprep.subr.mxu0 0.0
    %355 = vmatpush2.msra.mxu0 0.0
    %356 = vmatprep.subr.mxu0 0.0
    %357 = vmatpush2.msra.mxu0 0.0
    %358 = vmatprep.subr.mxu0 0.0
    %359 = vmatpush2.msra.mxu0 0.0
    %360 = vmatprep.subr.mxu0 0.0
    %361 = vmatpush2.msra.mxu0 0.0
    %362 = vmatprep.subr.mxu0 0.0
    %363 = vmatpush2.msra.mxu0 0.0
    %364 = vmatprep.mubr.f32.mxu0 0.0
    %365 = vmatmul.mubr.f32.gmra.mxu0 %v64
    %v366 = vpop.f32.mrf.mxu0
    %v367 = vadd.f32 0.0, %v366
    %v368 = vpop.f32.mrf.mxu0
    %369 = vmatprep.mubr.f32.mxu0 0.0
    %370 = vmatmul.mubr.f32.gmra.mxu0 %v67
    %v371 = vpop.f32.mrf.mxu0
    %v372 = vadd.f32 0.0, %v371
    %v373 = vpop.f32.mrf.mxu0
    %374 = vdwg.mxu0
    %s375 = scalar_lea.vmem [#allocation2], 32
    %v376 = vld [vmem:[%s375] sm:$0xff]
    %377 = vmatprep.subr.mxu0 0.0
    %378 = vmatpush1.msra.mxu0 0.0
    %379 = vmatprep.subr.mxu0 0.0
    %380 = vmatpush1.msra.mxu0 0.0
    %381 = vmatprep.subr.mxu0 0.0
    %382 = vmatpush1.msra.mxu0 0.0
    %383 = vmatprep.subr.mxu0 0.0
    %384 = vmatpush1.msra.mxu0 0.0
    %385 = vmatprep.subr.mxu0 0.0
    %386 = vmatpush1.msra.mxu0 0.0
    %387 = vmatprep.subr.mxu0 0.0
    %388 = vmatpush1.msra.mxu0 0.0
    %389 = vmatprep.subr.mxu0 0.0
    %390 = vmatpush1.msra.mxu0 0.0
    %391 = vmatprep.subr.mxu0 0.0
    %392 = vmatpush1.msra.mxu0 0.0
    %393 = vmatprep.subr.mxu0 0.0
    %394 = vmatpush1.msra.mxu0 0.0
    %395 = vmatprep.subr.mxu0 0.0
    %396 = vmatpush1.msra.mxu0 0.0
    %397 = vmatprep.subr.mxu0 0.0
    %398 = vmatpush1.msra.mxu0 0.0
    %399 = vmatprep.subr.mxu0 0.0
    %400 = vmatpush1.msra.mxu0 0.0
    %401 = vmatprep.subr.mxu0 0.0
    %402 = vmatpush1.msra.mxu0 0.0
    %403 = vmatprep.subr.mxu0 0.0
    %404 = vmatpush1.msra.mxu0 0.0
    %405 = vmatprep.subr.mxu0 0.0
    %406 = vmatpush1.msra.mxu0 0.0
    %407 = vmatprep.subr.mxu0 0.0
    %408 = vmatpush1.msra.mxu0 %v376
    %409 = vmatprep.subr.mxu0 0.0
    %410 = vmatpush2.msra.mxu0 0.0
    %411 = vmatprep.subr.mxu0 0.0
    %412 = vmatpush2.msra.mxu0 0.0
    %413 = vmatprep.subr.mxu0 0.0
    %414 = vmatpush2.msra.mxu0 0.0
    %415 = vmatprep.subr.mxu0 0.0
    %416 = vmatpush2.msra.mxu0 0.0
    %417 = vmatprep.subr.mxu0 0.0
    %418 = vmatpush2.msra.mxu0 0.0
    %419 = vmatprep.subr.mxu0 0.0
    %420 = vmatpush2.msra.mxu0 0.0
    %421 = vmatprep.subr.mxu0 0.0
    %422 = vmatpush2.msra.mxu0 0.0
    %423 = vmatprep.subr.mxu0 0.0
    %424 = vmatpush2.msra.mxu0 0.0
    %425 = vmatprep.subr.mxu0 0.0
    %426 = vmatpush2.msra.mxu0 0.0
    %427 = vmatprep.subr.mxu0 0.0
    %428 = vmatpush2.msra.mxu0 0.0
    %429 = vmatprep.subr.mxu0 0.0
    %430 = vmatpush2.msra.mxu0 0.0
    %431 = vmatprep.subr.mxu0 0.0
    %432 = vmatpush2.msra.mxu0 0.0
    %433 = vmatprep.subr.mxu0 0.0
    %434 = vmatpush2.msra.mxu0 0.0
    %435 = vmatprep.subr.mxu0 0.0
    %436 = vmatpush2.msra.mxu0 0.0
    %437 = vmatprep.subr.mxu0 0.0
    %438 = vmatpush2.msra.mxu0 0.0
    %439 = vmatprep.subr.mxu0 0.0
    %440 = vmatpush2.msra.mxu0 0.0
    %441 = vmatprep.mubr.f32.mxu0 0.0
    %442 = vmatmul.mubr.f32.gmra.mxu0 %v64
    %v443 = vpop.f32.mrf.mxu0
    %v444 = vadd.f32 0.0, %v443
    %v445 = vpop.f32.mrf.mxu0
    %446 = vmatprep.mubr.f32.mxu0 0.0
    %447 = vmatmul.mubr.f32.gmra.mxu0 %v67
    %v448 = vpop.f32.mrf.mxu0
    %v449 = vadd.f32 0.0, %v448
    %v450 = vpop.f32.mrf.mxu0
    %451 = vdwg.mxu0
    %s452 = scalar_lea.vmem [#allocation2], 40
    %v453 = vld [vmem:[%s452] sm:$0xff]
    %454 = vmatprep.subr.mxu0 0.0
    %455 = vmatpush1.msra.mxu0 0.0
    %456 = vmatprep.subr.mxu0 0.0
    %457 = vmatpush1.msra.mxu0 0.0
    %458 = vmatprep.subr.mxu0 0.0
    %459 = vmatpush1.msra.mxu0 0.0
    %460 = vmatprep.subr.mxu0 0.0
    %461 = vmatpush1.msra.mxu0 0.0
    %462 = vmatprep.subr.mxu0 0.0
    %463 = vmatpush1.msra.mxu0 0.0
    %464 = vmatprep.subr.mxu0 0.0
    %465 = vmatpush1.msra.mxu0 0.0
    %466 = vmatprep.subr.mxu0 0.0
    %467 = vmatpush1.msra.mxu0 0.0
    %468 = vmatprep.subr.mxu0 0.0
    %469 = vmatpush1.msra.mxu0 0.0
    %470 = vmatprep.subr.mxu0 0.0
    %471 = vmatpush1.msra.mxu0 0.0
    %472 = vmatprep.subr.mxu0 0.0
    %473 = vmatpush1.msra.mxu0 0.0
    %474 = vmatprep.subr.mxu0 0.0
    %475 = vmatpush1.msra.mxu0 0.0
    %476 = vmatprep.subr.mxu0 0.0
    %477 = vmatpush1.msra.mxu0 0.0
    %478 = vmatprep.subr.mxu0 0.0
    %479 = vmatpush1.msra.mxu0 0.0
    %480 = vmatprep.subr.mxu0 0.0
    %481 = vmatpush1.msra.mxu0 0.0
    %482 = vmatprep.subr.mxu0 0.0
    %483 = vmatpush1.msra.mxu0 0.0
    %484 = vmatprep.subr.mxu0 0.0
    %485 = vmatpush1.msra.mxu0 %v453
    %486 = vmatprep.subr.mxu0 0.0
    %487 = vmatpush2.msra.mxu0 0.0
    %488 = vmatprep.subr.mxu0 0.0
    %489 = vmatpush2.msra.mxu0 0.0
    %490 = vmatprep.subr.mxu0 0.0
    %491 = vmatpush2.msra.mxu0 0.0
    %492 = vmatprep.subr.mxu0 0.0
    %493 = vmatpush2.msra.mxu0 0.0
    %494 = vmatprep.subr.mxu0 0.0
    %495 = vmatpush2.msra.mxu0 0.0
    %496 = vmatprep.subr.mxu0 0.0
    %497 = vmatpush2.msra.mxu0 0.0
    %498 = vmatprep.subr.mxu0 0.0
    %499 = vmatpush2.msra.mxu0 0.0
    %500 = vmatprep.subr.mxu0 0.0
    %501 = vmatpush2.msra.mxu0 0.0
    %502 = vmatprep.subr.mxu0 0.0
    %503 = vmatpush2.msra.mxu0 0.0
    %504 = vmatprep.subr.mxu0 0.0
    %505 = vmatpush2.msra.mxu0 0.0
    %506 = vmatprep.subr.mxu0 0.0
    %507 = vmatpush2.msra.mxu0 0.0
    %508 = vmatprep.subr.mxu0 0.0
    %509 = vmatpush2.msra.mxu0 0.0
    %510 = vmatprep.subr.mxu0 0.0
    %511 = vmatpush2.msra.mxu0 0.0
    %512 = vmatprep.subr.mxu0 0.0
    %513 = vmatpush2.msra.mxu0 0.0
    %514 = vmatprep.subr.mxu0 0.0
    %515 = vmatpush2.msra.mxu0 0.0
    %516 = vmatprep.subr.mxu0 0.0
    %517 = vmatpush2.msra.mxu0 0.0
    %518 = vmatprep.mubr.f32.mxu0 0.0
    %519 = vmatmul.mubr.f32.gmra.mxu0 %v64
    %v520 = vpop.f32.mrf.mxu0
    %v521 = vadd.f32 0.0, %v520
    %v522 = vpop.f32.mrf.mxu0
    %523 = vmatprep.mubr.f32.mxu0 0.0
    %524 = vmatmul.mubr.f32.gmra.mxu0 %v67
    %v525 = vpop.f32.mrf.mxu0
    %v526 = vadd.f32 0.0, %v525
    %v527 = vpop.f32.mrf.mxu0
    %528 = vdwg.mxu0
    %s529 = scalar_lea.vmem [#allocation2], 48
    %v530 = vld [vmem:[%s529] sm:$0xff]
    %531 = vmatprep.subr.mxu0 0.0
    %532 = vmatpush1.msra.mxu0 0.0
    %533 = vmatprep.subr.mxu0 0.0
    %534 = vmatpush1.msra.mxu0 0.0
    %535 = vmatprep.subr.mxu0 0.0
    %536 = vmatpush1.msra.mxu0 0.0
    %537 = vmatprep.subr.mxu0 0.0
    %538 = vmatpush1.msra.mxu0 0.0
    %539 = vmatprep.subr.mxu0 0.0
    %540 = vmatpush1.msra.mxu0 0.0
    %541 = vmatprep.subr.mxu0 0.0
    %542 = vmatpush1.msra.mxu0 0.0
    %543 = vmatprep.subr.mxu0 0.0
    %544 = vmatpush1.msra.mxu0 0.0
    %545 = vmatprep.subr.mxu0 0.0
    %546 = vmatpush1.msra.mxu0 0.0
    %547 = vmatprep.subr.mxu0 0.0
    %548 = vmatpush1.msra.mxu0 0.0
    %549 = vmatprep.subr.mxu0 0.0
    %550 = vmatpush1.msra.mxu0 0.0
    %551 = vmatprep.subr.mxu0 0.0
    %552 = vmatpush1.msra.mxu0 0.0
    %553 = vmatprep.subr.mxu0 0.0
    %554 = vmatpush1.msra.mxu0 0.0
    %555 = vmatprep.subr.mxu0 0.0
    %556 = vmatpush1.msra.mxu0 0.0
    %557 = vmatprep.subr.mxu0 0.0
    %558 = vmatpush1.msra.mxu0 0.0
    %559 = vmatprep.subr.mxu0 0.0
    %560 = vmatpush1.msra.mxu0 0.0
    %561 = vmatprep.subr.mxu0 0.0
    %562 = vmatpush1.msra.mxu0 %v530
    %563 = vmatprep.subr.mxu0 0.0
    %564 = vmatpush2.msra.mxu0 0.0
    %565 = vmatprep.subr.mxu0 0.0
    %566 = vmatpush2.msra.mxu0 0.0
    %567 = vmatprep.subr.mxu0 0.0
    %568 = vmatpush2.msra.mxu0 0.0
    %569 = vmatprep.subr.mxu0 0.0
    %570 = vmatpush2.msra.mxu0 0.0
    %571 = vmatprep.subr.mxu0 0.0
    %572 = vmatpush2.msra.mxu0 0.0
    %573 = vmatprep.subr.mxu0 0.0
    %574 = vmatpush2.msra.mxu0 0.0
    %575 = vmatprep.subr.mxu0 0.0
    %576 = vmatpush2.msra.mxu0 0.0
    %577 = vmatprep.subr.mxu0 0.0
    %578 = vmatpush2.msra.mxu0 0.0
    %579 = vmatprep.subr.mxu0 0.0
    %580 = vmatpush2.msra.mxu0 0.0
    %581 = vmatprep.subr.mxu0 0.0
    %582 = vmatpush2.msra.mxu0 0.0
    %583 = vmatprep.subr.mxu0 0.0
    %584 = vmatpush2.msra.mxu0 0.0
    %585 = vmatprep.subr.mxu0 0.0
    %586 = vmatpush2.msra.mxu0 0.0
    %587 = vmatprep.subr.mxu0 0.0
    %588 = vmatpush2.msra.mxu0 0.0
    %589 = vmatprep.subr.mxu0 0.0
    %590 = vmatpush2.msra.mxu0 0.0
    %591 = vmatprep.subr.mxu0 0.0
    %592 = vmatpush2.msra.mxu0 0.0
    %593 = vmatprep.subr.mxu0 0.0
    %594 = vmatpush2.msra.mxu0 0.0
    %595 = vmatprep.mubr.f32.mxu0 0.0
    %596 = vmatmul.mubr.f32.gmra.mxu0 %v64
    %v597 = vpop.f32.mrf.mxu0
    %v598 = vadd.f32 0.0, %v597
    %v599 = vpop.f32.mrf.mxu0
    %600 = vmatprep.mubr.f32.mxu0 0.0
    %601 = vmatmul.mubr.f32.gmra.mxu0 %v67
    %v602 = vpop.f32.mrf.mxu0
    %v603 = vadd.f32 0.0, %v602
    %v604 = vpop.f32.mrf.mxu0
    %605 = vdwg.mxu0
    %s606 = scalar_lea.vmem [#allocation2], 56
    %v607 = vld [vmem:[%s606] sm:$0xff]
    %608 = vmatprep.subr.mxu0 0.0
    %609 = vmatpush1.msra.mxu0 0.0
    %610 = vmatprep.subr.mxu0 0.0
    %611 = vmatpush1.msra.mxu0 0.0
    %612 = vmatprep.subr.mxu0 0.0
    %613 = vmatpush1.msra.mxu0 0.0
    %614 = vmatprep.subr.mxu0 0.0
    %615 = vmatpush1.msra.mxu0 0.0
    %616 = vmatprep.subr.mxu0 0.0
    %617 = vmatpush1.msra.mxu0 0.0
    %618 = vmatprep.subr.mxu0 0.0
    %619 = vmatpush1.msra.mxu0 0.0
    %620 = vmatprep.subr.mxu0 0.0
    %621 = vmatpush1.msra.mxu0 0.0
    %622 = vmatprep.subr.mxu0 0.0
    %623 = vmatpush1.msra.mxu0 0.0
    %624 = vmatprep.subr.mxu0 0.0
    %625 = vmatpush1.msra.mxu0 0.0
    %626 = vmatprep.subr.mxu0 0.0
    %627 = vmatpush1.msra.mxu0 0.0
    %628 = vmatprep.subr.mxu0 0.0
    %629 = vmatpush1.msra.mxu0 0.0
    %630 = vmatprep.subr.mxu0 0.0
    %631 = vmatpush1.msra.mxu0 0.0
    %632 = vmatprep.subr.mxu0 0.0
    %633 = vmatpush1.msra.mxu0 0.0
    %634 = vmatprep.subr.mxu0 0.0
    %635 = vmatpush1.msra.mxu0 0.0
    %636 = vmatprep.subr.mxu0 0.0
    %637 = vmatpush1.msra.mxu0 0.0
    %638 = vmatprep.subr.mxu0 0.0
    %639 = vmatpush1.msra.mxu0 %v607
    %640 = vmatprep.subr.mxu0 0.0
    %641 = vmatpush2.msra.mxu0 0.0
    %642 = vmatprep.subr.mxu0 0.0
    %643 = vmatpush2.msra.mxu0 0.0
    %644 = vmatprep.subr.mxu0 0.0
    %645 = vmatpush2.msra.mxu0 0.0
    %646 = vmatprep.subr.mxu0 0.0
    %647 = vmatpush2.msra.mxu0 0.0
    %648 = vmatprep.subr.mxu0 0.0
    %649 = vmatpush2.msra.mxu0 0.0
    %650 = vmatprep.subr.mxu0 0.0
    %651 = vmatpush2.msra.mxu0 0.0
    %652 = vmatprep.subr.mxu0 0.0
    %653 = vmatpush2.msra.mxu0 0.0
    %654 = vmatprep.subr.mxu0 0.0
    %655 = vmatpush2.msra.mxu0 0.0
    %656 = vmatprep.subr.mxu0 0.0
    %657 = vmatpush2.msra.mxu0 0.0
    %658 = vmatprep.subr.mxu0 0.0
    %659 = vmatpush2.msra.mxu0 0.0
    %660 = vmatprep.subr.mxu0 0.0
    %661 = vmatpush2.msra.mxu0 0.0
    %662 = vmatprep.subr.mxu0 0.0
    %663 = vmatpush2.msra.mxu0 0.0
    %664 = vmatprep.subr.mxu0 0.0
    %665 = vmatpush2.msra.mxu0 0.0
    %666 = vmatprep.subr.mxu0 0.0
    %667 = vmatpush2.msra.mxu0 0.0
    %668 = vmatprep.subr.mxu0 0.0
    %669 = vmatpush2.msra.mxu0 0.0
    %670 = vmatprep.subr.mxu0 0.0
    %671 = vmatpush2.msra.mxu0 0.0
    %672 = vmatprep.mubr.f32.mxu0 0.0
    %673 = vmatmul.mubr.f32.gmra.mxu0 %v64
    %v674 = vpop.f32.mrf.mxu0
    %v675 = vadd.f32 0.0, %v674
    %v676 = vpop.f32.mrf.mxu0
    %677 = vmatprep.mubr.f32.mxu0 0.0
    %678 = vmatmul.mubr.f32.gmra.mxu0 %v67
    %v679 = vpop.f32.mrf.mxu0
    %v680 = vadd.f32 0.0, %v679
    %v681 = vpop.f32.mrf.mxu0
    %682 = vdwg.mxu0
    %vm683 = vcmask 523264
    %v685 = vsel %vm683, %v136, 0
    %v688 = vsel %vm683, %v141, 0
    %v691 = vsel %vm683, %v213, 0
    %v694 = vsel %vm683, %v218, 0
    %v697 = vsel %vm683, %v290, 0
    %v700 = vsel %vm683, %v295, 0
    %v703 = vsel %vm683, %v367, 0
    %v706 = vsel %vm683, %v372, 0
    %v709 = vsel %vm683, %v444, 0
    %v712 = vsel %vm683, %v449, 0
    %v715 = vsel %vm683, %v521, 0
    %v718 = vsel %vm683, %v526, 0
    %v721 = vsel %vm683, %v598, 0
    %v724 = vsel %vm683, %v603, 0
    %v727 = vsel %vm683, %v675, 0
    %v730 = vsel %vm683, %v680, 0
    %732 = vmatprep.subr.mxu0 0.0
    %733 = vmatpush1.msra.mxu0 0.0
    %734 = vmatprep.subr.mxu0 0.0
    %735 = vmatpush1.msra.mxu0 0.0
    %736 = vmatprep.subr.mxu0 0.0
    %737 = vmatpush1.msra.mxu0 0.0
    %738 = vmatprep.subr.mxu0 0.0
    %739 = vmatpush1.msra.mxu0 0.0
    %740 = vmatprep.subr.mxu0 0.0
    %741 = vmatpush1.msra.mxu0 0.0
    %742 = vmatprep.subr.mxu0 0.0
    %743 = vmatpush1.msra.mxu0 0.0
    %744 = vmatprep.subr.mxu0 0.0
    %745 = vmatpush1.msra.mxu0 0.0
    %746 = vmatprep.subr.mxu0 0.0
    %747 = vmatpush1.msra.mxu0 0.0
    %748 = vmatprep.subr.mxu0 %v60
    %749 = vmatpush1.msra.mxu0 %v59
    %750 = vmatprep.subr.mxu0 %v58
    %751 = vmatpush1.msra.mxu0 %v57
    %752 = vmatprep.subr.mxu0 %v56
    %753 = vmatpush1.msra.mxu0 %v55
    %754 = vmatprep.subr.mxu0 %v54
    %755 = vmatpush1.msra.mxu0 %v53
    %756 = vmatprep.subr.mxu0 %v52
    %757 = vmatpush1.msra.mxu0 %v51
    %758 = vmatprep.subr.mxu0 %v50
    %759 = vmatpush1.msra.mxu0 %v49
    %760 = vmatprep.subr.mxu0 %v48
    %761 = vmatpush1.msra.mxu0 %v47
    %762 = vmatprep.subr.mxu0 %v46
    %763 = vmatpush1.msra.mxu0 %v45
    %764 = vmatprep.subr.mxu0 0.0
    %765 = vmatpush2.msra.mxu0 0.0
    %766 = vmatprep.subr.mxu0 0.0
    %767 = vmatpush2.msra.mxu0 0.0
    %768 = vmatprep.subr.mxu0 0.0
    %769 = vmatpush2.msra.mxu0 0.0
    %770 = vmatprep.subr.mxu0 0.0
    %771 = vmatpush2.msra.mxu0 0.0
    %772 = vmatprep.subr.mxu0 0.0
    %773 = vmatpush2.msra.mxu0 0.0
    %774 = vmatprep.subr.mxu0 0.0
    %775 = vmatpush2.msra.mxu0 0.0
    %776 = vmatprep.subr.mxu0 0.0
    %777 = vmatpush2.msra.mxu0 0.0
    %778 = vmatprep.subr.mxu0 0.0
    %779 = vmatpush2.msra.mxu0 0.0
    %780 = vmatprep.subr.mxu0 0.0
    %781 = vmatpush2.msra.mxu0 0.0
    %782 = vmatprep.subr.mxu0 0.0
    %783 = vmatpush2.msra.mxu0 0.0
    %784 = vmatprep.subr.mxu0 0.0
    %785 = vmatpush2.msra.mxu0 0.0
    %786 = vmatprep.subr.mxu0 0.0
    %787 = vmatpush2.msra.mxu0 0.0
    %788 = vmatprep.subr.mxu0 0.0
    %789 = vmatpush2.msra.mxu0 0.0
    %790 = vmatprep.subr.mxu0 0.0
    %791 = vmatpush2.msra.mxu0 0.0
    %792 = vmatprep.subr.mxu0 0.0
    %793 = vmatpush2.msra.mxu0 0.0
    %794 = vmatprep.subr.mxu0 0.0
    %795 = vmatpush2.msra.mxu0 0.0
    %796 = vmatprep.mubr.f32.mxu0 0.0
    %797 = vmatmul.mubr.f32.gmra.mxu0 %v685
    %v798 = vpop.f32.mrf.mxu0
    %v799 = vadd.f32 0.0, %v798
    %v800 = vpop.f32.mrf.mxu0
    %v801 = vadd.f32 0.0, %v800
    %802 = vmatprep.mubr.f32.mxu0 0.0
    %803 = vmatmul.mubr.f32.gmra.mxu0 %v688
    %v804 = vpop.f32.mrf.mxu0
    %v805 = vadd.f32 0.0, %v804
    %v806 = vpop.f32.mrf.mxu0
    %v807 = vadd.f32 0.0, %v806
    %808 = vmatprep.mubr.f32.mxu0 0.0
    %809 = vmatmul.mubr.f32.gmra.mxu0 %v691
    %v810 = vpop.f32.mrf.mxu0
    %v811 = vadd.f32 0.0, %v810
    %v812 = vpop.f32.mrf.mxu0
    %v813 = vadd.f32 0.0, %v812
    %814 = vmatprep.mubr.f32.mxu0 0.0
    %815 = vmatmul.mubr.f32.gmra.mxu0 %v694
    %v816 = vpop.f32.mrf.mxu0
    %v817 = vadd.f32 0.0, %v816
    %v818 = vpop.f32.mrf.mxu0
    %v819 = vadd.f32 0.0, %v818
    %820 = vmatprep.mubr.f32.mxu0 0.0
    %821 = vmatmul.mubr.f32.gmra.mxu0 %v697
    %v822 = vpop.f32.mrf.mxu0
    %v823 = vadd.f32 0.0, %v822
    %v824 = vpop.f32.mrf.mxu0
    %v825 = vadd.f32 0.0, %v824
    %826 = vmatprep.mubr.f32.mxu0 0.0
    %827 = vmatmul.mubr.f32.gmra.mxu0 %v700
    %v828 = vpop.f32.mrf.mxu0
    %v829 = vadd.f32 0.0, %v828
    %v830 = vpop.f32.mrf.mxu0
    %v831 = vadd.f32 0.0, %v830
    %832 = vmatprep.mubr.f32.mxu0 0.0
    %833 = vmatmul.mubr.f32.gmra.mxu0 %v703
    %v834 = vpop.f32.mrf.mxu0
    %v835 = vadd.f32 0.0, %v834
    %v836 = vpop.f32.mrf.mxu0
    %v837 = vadd.f32 0.0, %v836
    %838 = vmatprep.mubr.f32.mxu0 0.0
    %839 = vmatmul.mubr.f32.gmra.mxu0 %v706
    %v840 = vpop.f32.mrf.mxu0
    %v841 = vadd.f32 0.0, %v840
    %v842 = vpop.f32.mrf.mxu0
    %v843 = vadd.f32 0.0, %v842
    %844 = vmatprep.mubr.f32.mxu0 0.0
    %845 = vmatmul.mubr.f32.gmra.mxu0 %v709
    %v846 = vpop.f32.mrf.mxu0
    %v847 = vadd.f32 0.0, %v846
    %v848 = vpop.f32.mrf.mxu0
    %v849 = vadd.f32 0.0, %v848
    %850 = vmatprep.mubr.f32.mxu0 0.0
    %851 = vmatmul.mubr.f32.gmra.mxu0 %v712
    %v852 = vpop.f32.mrf.mxu0
    %v853 = vadd.f32 0.0, %v852
    %v854 = vpop.f32.mrf.mxu0
    %v855 = vadd.f32 0.0, %v854
    %856 = vmatprep.mubr.f32.mxu0 0.0
    %857 = vmatmul.mubr.f32.gmra.mxu0 %v715
    %v858 = vpop.f32.mrf.mxu0
    %v859 = vadd.f32 0.0, %v858
    %v860 = vpop.f32.mrf.mxu0
    %v861 = vadd.f32 0.0, %v860
    %862 = vmatprep.mubr.f32.mxu0 0.0
    %863 = vmatmul.mubr.f32.gmra.mxu0 %v718
    %v864 = vpop.f32.mrf.mxu0
    %v865 = vadd.f32 0.0, %v864
    %v866 = vpop.f32.mrf.mxu0
    %v867 = vadd.f32 0.0, %v866
    %868 = vmatprep.mubr.f32.mxu0 0.0
    %869 = vmatmul.mubr.f32.gmra.mxu0 %v721
    %v870 = vpop.f32.mrf.mxu0
    %v871 = vadd.f32 0.0, %v870
    %v872 = vpop.f32.mrf.mxu0
    %v873 = vadd.f32 0.0, %v872
    %874 = vmatprep.mubr.f32.mxu0 0.0
    %875 = vmatmul.mubr.f32.gmra.mxu0 %v724
    %v876 = vpop.f32.mrf.mxu0
    %v877 = vadd.f32 0.0, %v876
    %v878 = vpop.f32.mrf.mxu0
    %v879 = vadd.f32 0.0, %v878
    %880 = vmatprep.mubr.f32.mxu0 0.0
    %881 = vmatmul.mubr.f32.gmra.mxu0 %v727
    %v882 = vpop.f32.mrf.mxu0
    %v883 = vadd.f32 0.0, %v882
    %v884 = vpop.f32.mrf.mxu0
    %v885 = vadd.f32 0.0, %v884
    %886 = vmatprep.mubr.f32.mxu0 0.0
    %887 = vmatmul.mubr.f32.gmra.mxu0 %v730
    %v888 = vpop.f32.mrf.mxu0
    %v889 = vadd.f32 0.0, %v888
    %v890 = vpop.f32.mrf.mxu0
    %v891 = vadd.f32 0.0, %v890
    %892 = vdwg.mxu0
    %893 = vst [vmem:[#allocation7] sm:$0xff] %v799
    %894 = vst [vmem:[#allocation7 + $0x8] sm:$0xff] %v801
    %895 = vst [vmem:[#allocation7 + $0x10] sm:$0xff] %v805
    %896 = vst [vmem:[#allocation7 + $0x18] sm:$0xff] %v807
    %897 = vst [vmem:[#allocation7 + $0x20] sm:$0xff] %v811
    %898 = vst [vmem:[#allocation7 + $0x28] sm:$0xff] %v813
    %899 = vst [vmem:[#allocation7 + $0x30] sm:$0xff] %v817
    %900 = vst [vmem:[#allocation7 + $0x38] sm:$0xff] %v819
    %901 = vst [vmem:[#allocation7 + $0x40] sm:$0xff] %v823
    %902 = vst [vmem:[#allocation7 + $0x48] sm:$0xff] %v825
    %903 = vst [vmem:[#allocation7 + $0x50] sm:$0xff] %v829
    %904 = vst [vmem:[#allocation7 + $0x58] sm:$0xff] %v831
    %905 = vst [vmem:[#allocation7 + $0x60] sm:$0xff] %v835
    %906 = vst [vmem:[#allocation7 + $0x68] sm:$0xff] %v837
    %907 = vst [vmem:[#allocation7 + $0x70] sm:$0xff] %v841
    %908 = vst [vmem:[#allocation7 + $0x78] sm:$0xff] %v843
    %909 = vst [vmem:[#allocation7 + $0x80] sm:$0xff] %v847
    %910 = vst [vmem:[#allocation7 + $0x88] sm:$0xff] %v849
    %911 = vst [vmem:[#allocation7 + $0x90] sm:$0xff] %v853
    %912 = vst [vmem:[#allocation7 + $0x98] sm:$0xff] %v855
    %913 = vst [vmem:[#allocation7 + $0xa0] sm:$0xff] %v859
    %914 = vst [vmem:[#allocation7 + $0xa8] sm:$0xff] %v861
    %915 = vst [vmem:[#allocation7 + $0xb0] sm:$0xff] %v865
    %916 = vst [vmem:[#allocation7 + $0xb8] sm:$0xff] %v867
    %917 = vst [vmem:[#allocation7 + $0xc0] sm:$0xff] %v871
    %918 = vst [vmem:[#allocation7 + $0xc8] sm:$0xff] %v873
    %919 = vst [vmem:[#allocation7 + $0xd0] sm:$0xff] %v877
    %920 = vst [vmem:[#allocation7 + $0xd8] sm:$0xff] %v879
    %921 = vst [vmem:[#allocation7 + $0xe0] sm:$0xff] %v883
    %922 = vst [vmem:[#allocation7 + $0xe8] sm:$0xff] %v885
    %923 = vst [vmem:[#allocation7 + $0xf0] sm:$0xff] %v889
    %924 = vst [vmem:[#allocation7 + $0xf8] sm:$0xff] %v891
    // Predicated region
    $region22: #{tpu_custom_call.1} parent=1 // pred_check
      _
    $region23: #{tpu_custom_call.1} parent=1 // pred_check_branch
      %926 = sbr.rel (0) target = $region25
    $region24: #{tpu_custom_call.1} parent=1 // pred_region
      %s928 = ssub.s32 4096, 4096
      %929 = vsyncadd [#allocation4], %s928
      %s930 = sshll.u32 [#allocation7], 4
      %s931 = int_to_ptr.vmem [resolvable:$true] %s930
      %936 = dma.vmem_to_hbm [thread:$0]  %s931, 4096, %s3, [#allocation4], 256, 256, 16
    $region25: #{tpu_custom_call.1} parent=1 // pred_fallthru
      _
    // Predicated region
    $region26: #{tpu_custom_call.1} parent=1 // pred_check
      _
    $region27: #{tpu_custom_call.1} parent=1 // pred_check_branch
      %938 = sbr.rel (0) target = $region29
    $region28: #{tpu_custom_call.1} parent=1 // pred_region
      %939 = dma.done [#allocation4], 4096
    $region29: #{tpu_custom_call.1} parent=1 // pred_fallthru
      _
    %940 = vsyncpa [#allocation3], 1
    %941 = vsyncpa [#allocation6], 1
    %942 = vsyncpa [#allocation4], 1

</llo_original>
